<compile_context>
chip_gen: v5e
topology: v5e:2x2
jax: 0.10.0
libtpu: 0.0.40
codegen_flags: <defaults>
</compile_context>

<pallas_src>
import jax
import jax.numpy as jnp
from jax.experimental import pallas as pl
from jax.experimental.pallas import tpu as pltpu

_LANE = 128   # lane width (last dim)
_SUBLANE = 8  # f32 sublane group (second-to-last dim)


def _round_up(n, m):
    return ((n + m - 1) // m) * m


def _ssm_kernel(xu_ref, w_ref, o_ref):
    # Single fused contraction on the MXU: (b_pad, k_pad) x (k_pad, n_pad).
    # Weights were pre-transposed in the wrapper, so this is already the
    # canonical (m,k)x(k,n) form -> no in-kernel transpose, f32 accumulation.
    o_ref[...] = jnp.dot(
        xu_ref[...], w_ref[...], preferred_element_type=jnp.float32
    ).astype(o_ref.dtype)


def ssm_forward(x, u, A, B):
    assert x.ndim == 2 and u.ndim == 2
    batch, nx = x.shape
    batch_u, nu = u.shape
    assert batch_u == batch, "x and u must have the same batch size"
    assert A.shape == (nx, nx)
    assert B.shape == (nx, nu)

    dtype = x.dtype
    k = nx + nu

    # ---- wrapper-side layout plumbing (outside the kernel) ----------------
    # Fuse the two matmuls:  out = [x | u] @ [A | B].T
    xu = jnp.concatenate([x, u], axis=1)                      # (batch, nx+nu)
    w_t = jnp.concatenate([A, B], axis=1).T.astype(dtype)     # (nx+nu, nx)

    # Pad to lane/sublane-dense shapes (zeros don't change the result).
    b_pad = _round_up(batch, _SUBLANE)
    k_pad = _round_up(k, _LANE)
    n_pad = _round_up(nx, _LANE)

    xu_p = jnp.zeros((b_pad, k_pad), dtype).at[:batch, :k].set(xu)
    w_p = jnp.zeros((k_pad, n_pad), dtype).at[:k, :nx].set(w_t)

    # ---- single-block kernel: no grid, whole operands resident in VMEM ----
    out_p = pl.pallas_call(
        _ssm_kernel,
        out_shape=jax.ShapeDtypeStruct((b_pad, n_pad), dtype),
        in_specs=[
            pl.BlockSpec(memory_space=pltpu.MemorySpace.VMEM),
            pl.BlockSpec(memory_space=pltpu.MemorySpace.VMEM),
        ],
        out_specs=pl.BlockSpec(memory_space=pltpu.MemorySpace.VMEM),
    )(xu_p, w_p)

    return out_p[:batch, :nx]


if __name__ == "__main__":
    # Small shapes consistent with the module: batch=8, nx=32, nu=16.
    batch, nx, nu = 8, 32, 16

    key = jax.random.PRNGKey(0)
    kx, ku, ka, kb = jax.random.split(key, 4)

    x = jax.random.normal(kx, (batch, nx), dtype=jnp.float32)
    u = jax.random.normal(ku, (batch, nu), dtype=jnp.float32)
    # Deterministic parameter init (A, B would be passed to SSM.__init__).
    A = jax.random.normal(ka, (nx, nx), dtype=jnp.float32) * 0.1
    B = jax.random.normal(kb, (nx, nu), dtype=jnp.float32) * 0.1

    out = ssm_forward(x, u, A, B)
    jax.block_until_ready(out)

    # Reference check in plain JAX (same math as the PyTorch forward).
    ref = x @ A.T + u @ B.T
    assert out.shape == (batch, nx)
    assert jnp.allclose(out, ref, atol=1e-5, rtol=1e-5)

    print("KERNEL_OK")
</pallas_src>

<mosaic_0001>
module attributes {stable_mosaic.version = 11 : i64} {
  func.func @_ssm_kernel(%arg0: memref<8x128xf32, #tpu.memory_space<vmem>>, %arg1: memref<128x128xf32, #tpu.memory_space<vmem>>, %arg2: memref<8x128xf32, #tpu.memory_space<vmem>>) attributes {dimension_semantics = [], scalar_prefetch = 0 : i64, scratch_operands = 0 : i64, tpu.core_type = #tpu.core_type<tc>} {
    %c0 = arith.constant 0 : index
    %c0_0 = arith.constant 0 : index
    %0 = vector.load %arg0[%c0, %c0_0] : memref<8x128xf32, #tpu.memory_space<vmem>>, vector<8x128xf32>
    %c0_1 = arith.constant 0 : index
    %c0_2 = arith.constant 0 : index
    %1 = vector.load %arg1[%c0_1, %c0_2] : memref<128x128xf32, #tpu.memory_space<vmem>>, vector<128x128xf32>
    %cst = arith.constant dense<0.000000e+00> : vector<8x128xf32>
    %2 = tpu.matmul %0, %1, %cst {dimension_numbers = #tpu.dot_dimension_numbers<[1], [0], [0], [1], [0, 0, 1, 1], [], []>} : vector<8x128xf32>, vector<128x128xf32>, vector<8x128xf32> -> vector<8x128xf32>
    %c0_3 = arith.constant 0 : index
    %c0_4 = arith.constant 0 : index
    %3 = vector.load %arg2[%c0_3, %c0_4] : memref<8x128xf32, #tpu.memory_space<vmem>>, vector<8x128xf32>
    tpu.vector_store %arg2[%c0_3, %c0_4], %2 {strides = array<i32>} : memref<8x128xf32, #tpu.memory_space<vmem>>, vector<8x128xf32>,
    return
  }
}

</mosaic_0001>

<llo_original>
// kernel: tpu_custom_call.1
$region0: #{tpu_custom_call.1}
  #allocation0 [shape = 'u32[]', space=smem, size = 0x4, offset = 0x4, fixed_abs, tag = 'smem constant byte address 0x4 - core index']
  #allocation1 [shape = 'u32[72,128]{1,0:T(1,128)}', space=vmem, size = 0x9000, scoped, tag = 'internal scratch']
  %s0 = inlined_call_operand.hbm [shape: f32[8,128], index: 0, kind: input, shape index: {}]
  %s1 = inlined_call_operand.hbm [shape: f32[128,128], index: 1, kind: input, shape index: {}]
  %s2 = inlined_call_operand.hbm [shape: f32[8,128], index: 2, kind: output, shape index: {}]
  %s3 = sld [smem:[#allocation0]]
  $region26: #{tpu_custom_call.1} parent=0
    _
  %s5 = ssub.s32 1, %s3
  %s6 = scalar_select 0, %s5, %s3
  $region1: #{tpu_custom_call.1} parent=0
    #allocation2 [shape = 'u8[4096]{0}', space=vmem, size = 0x1000, scoped, tag = 'input window, operand 0, single buffered']
    #allocation3 [shape = 's32[1]{0}', space=sflag, size = 0x4, scoped, tag = 'scoped memory for tpu_custom_call.1']
    #allocation4 [shape = 's32[1]{0}', space=sflag, size = 0x4, scoped, tag = 'scoped memory for tpu_custom_call.1']
    #allocation5 [shape = 'u8[65536]{0}', space=vmem, size = 0x10000, scoped, tag = 'input window, operand 1, single buffered']
    #allocation6 [shape = 's32[1]{0}', space=sflag, size = 0x4, scoped, tag = 'scoped memory for tpu_custom_call.1']
    #allocation7 [shape = 'u8[4096]{0}', space=vmem, size = 0x1000, scoped, tag = 'output window, operand 0, single buffered']
    %7 = vsyncpa [#allocation3], 0
    %8 = vsyncpa [#allocation6], 0
    %9 = vsyncpa [#allocation4], 0
    // Predicated region
    $region2: #{tpu_custom_call.1} parent=1 // pred_check
      _
    $region3: #{tpu_custom_call.1} parent=1 // pred_check_branch
      %11 = sbr.rel (0) target = $region5
    $region4: #{tpu_custom_call.1} parent=1 // pred_region
      %13 = vsyncadd [#allocation3], 0
      %s15 = sshll.u32 %s0, 4
      %s16 = int_to_ptr.hbm [resolvable:$true] %s15
      %s17 = sshll.u32 [#allocation2], 4
      %s18 = int_to_ptr.vmem [resolvable:$true] %s17
      %20 = dma.hbm_to_vmem [thread:$0]  %s16, 128, %s18, [#allocation3]
    $region5: #{tpu_custom_call.1} parent=1 // pred_fallthru
      _
    // Predicated region
    $region6: #{tpu_custom_call.1} parent=1 // pred_check
      _
    $region7: #{tpu_custom_call.1} parent=1 // pred_check_branch
      %22 = sbr.rel (0) target = $region9
    $region8: #{tpu_custom_call.1} parent=1 // pred_region
      %24 = vsyncadd [#allocation6], 0
      %s25 = sshll.u32 %s1, 4
      %s26 = int_to_ptr.hbm [resolvable:$true] %s25
      %s27 = sshll.u32 [#allocation5], 4
      %s28 = int_to_ptr.vmem [resolvable:$true] %s27
      %33 = dma.hbm_to_vmem [thread:$0]  %s26, 2048, %s28, [#allocation6], 128, 128, 8
    $region9: #{tpu_custom_call.1} parent=1 // pred_fallthru
      _
    // Predicated region
    $region10: #{tpu_custom_call.1} parent=1 // pred_check
      _
    $region11: #{tpu_custom_call.1} parent=1 // pred_check_branch
      %35 = sbr.rel (0) target = $region13
    $region12: #{tpu_custom_call.1} parent=1 // pred_region
      %37 = dma.done [#allocation3], 128
    $region13: #{tpu_custom_call.1} parent=1 // pred_fallthru
      _
    // Predicated region
    $region14: #{tpu_custom_call.1} parent=1 // pred_check
      _
    $region15: #{tpu_custom_call.1} parent=1 // pred_check_branch
      %39 = sbr.rel (0) target = $region17
    $region16: #{tpu_custom_call.1} parent=1 // pred_region
      %41 = dma.done [#allocation6], 2048
    $region17: #{tpu_custom_call.1} parent=1 // pred_fallthru
      _
    %v42 = vld [vmem:[#allocation2] sm:$0xff]
    %v43 = vld [vmem:[#allocation5] sm:$0xff]
    %v44 = vld [vmem:[#allocation5 + $0x8] sm:$0xff]
    %v45 = vld [vmem:[#allocation5 + $0x10] sm:$0xff]
    %v46 = vld [vmem:[#allocation5 + $0x18] sm:$0xff]
    %v47 = vld [vmem:[#allocation5 + $0x20] sm:$0xff]
    %v48 = vld [vmem:[#allocation5 + $0x28] sm:$0xff]
    %v49 = vld [vmem:[#allocation5 + $0x30] sm:$0xff]
    %v50 = vld [vmem:[#allocation5 + $0x38] sm:$0xff]
    %v51 = vld [vmem:[#allocation5 + $0x40] sm:$0xff]
    %v52 = vld [vmem:[#allocation5 + $0x48] sm:$0xff]
    %v53 = vld [vmem:[#allocation5 + $0x50] sm:$0xff]
    %v54 = vld [vmem:[#allocation5 + $0x58] sm:$0xff]
    %v55 = vld [vmem:[#allocation5 + $0x60] sm:$0xff]
    %v56 = vld [vmem:[#allocation5 + $0x68] sm:$0xff]
    %v57 = vld [vmem:[#allocation5 + $0x70] sm:$0xff]
    %v58 = vld [vmem:[#allocation5 + $0x78] sm:$0xff]
    %59 = vmatpush.msra.mxu0 %v58
    %60 = vmatpush.msra.mxu0 %v57
    %61 = vmatpush.msra.mxu0 %v56
    %62 = vmatpush.msra.mxu0 %v55
    %63 = vmatpush.msra.mxu0 %v54
    %64 = vmatpush.msra.mxu0 %v53
    %65 = vmatpush.msra.mxu0 %v52
    %66 = vmatpush.msra.mxu0 %v51
    %67 = vmatpush.msra.mxu0 %v50
    %68 = vmatpush.msra.mxu0 %v49
    %69 = vmatpush.msra.mxu0 %v48
    %70 = vmatpush.msra.mxu0 %v47
    %71 = vmatpush.msra.mxu0 %v46
    %72 = vmatpush.msra.mxu0 %v45
    %73 = vmatpush.msra.mxu0 %v44
    %74 = vmatpush.msra.mxu0 %v43
    %75 = vmatmul.f32.gmra.mxu0 %v42
    %v76 = vpop.f32.mrf.mxu0
    %v77 = vadd.f32 0.0, %v76
    %78 = vdwg.mxu0
    %79 = vst [vmem:[#allocation7] sm:$0xff] %v77
    // Predicated region
    $region18: #{tpu_custom_call.1} parent=1 // pred_check
      _
    $region19: #{tpu_custom_call.1} parent=1 // pred_check_branch
      %81 = sbr.rel (0) target = $region21
    $region20: #{tpu_custom_call.1} parent=1 // pred_region
      %83 = vsyncadd [#allocation4], 0
      %s85 = sshll.u32 [#allocation7], 4
      %s86 = int_to_ptr.vmem [resolvable:$true] %s85
      %s87 = sshll.u32 %s2, 4
      %s88 = int_to_ptr.hbm [resolvable:$true] %s87
      %90 = dma.vmem_to_hbm [thread:$0]  %s86, 128, %s88, [#allocation4]
    $region21: #{tpu_custom_call.1} parent=1 // pred_fallthru
      _
    // Predicated region
    $region22: #{tpu_custom_call.1} parent=1 // pred_check
      _
    $region23: #{tpu_custom_call.1} parent=1 // pred_check_branch
      %92 = sbr.rel (0) target = $region25
    $region24: #{tpu_custom_call.1} parent=1 // pred_region
      %94 = dma.done [#allocation4], 128
    $region25: #{tpu_custom_call.1} parent=1 // pred_fallthru
      _
    %95 = vsyncpa [#allocation3], 1
    %96 = vsyncpa [#allocation6], 1
    %97 = vsyncpa [#allocation4], 1

</llo_original>
